<compile_context>
chip_gen: v5e
topology: v5e:2x2
jax: 0.10.0
libtpu: 0.0.40
codegen_flags: <defaults>
</compile_context>

<pallas_src>
import functools

import jax
import jax.numpy as jnp
from jax.experimental import pallas as pl
from jax.experimental.pallas import tpu as pltpu

_LANE = 128


def _round_up(x, m):
    return ((x + m - 1) // m) * m


def _sublane_multiple(itemsize):
    # Packed-sublane tiling: 32-bit -> 8 rows, 16-bit -> 16, 8-bit -> 32.
    return {4: 8, 2: 16, 1: 32}.get(int(itemsize), 8)


# --------------------------------------------------------------------------------------
# Fast path: one column tile covers the whole class dimension -> single-pass softmax.
# --------------------------------------------------------------------------------------
def _single_pass_kernel(out_ref, lbl_ref, nll_ref, *, margin, scale):
    x = out_ref[...].astype(jnp.float32)            # (rows, C)
    labels = lbl_ref[...]                           # (rows, 1) int32
    cols = x.shape[-1]

    # (1, C) class-index row, broadcast against (rows, 1) labels -> no full-tile int plane.
    col_ids = jax.lax.broadcasted_iota(jnp.int32, (1, cols), 1)
    is_target = col_ids == labels                   # (rows, C) bool

    # AngularMargin applied on the fly, specialized at trace time.
    pred = x if scale == 1.0 else scale * x
    if margin != 0.0:
        pred = pred - (scale * margin) * is_target.astype(jnp.float32)

    # Target logit (exactly one true column per valid row).
    t = jnp.sum(jnp.where(is_target, pred, 0.0), axis=1, keepdims=True)

    # Single-pass logsumexp; nll = logsumexp(pred) - pred[label].
    m = jnp.max(pred, axis=1, keepdims=True)
    lse = m + jnp.log(jnp.sum(jnp.exp(pred - m), axis=1, keepdims=True))
    nll_ref[...] = (lse - t).astype(nll_ref.dtype)


# --------------------------------------------------------------------------------------
# Fallback path (very large C): online logsumexp over column tiles.
# --------------------------------------------------------------------------------------
def _online_kernel(out_ref, lbl_ref, nll_ref, m_sc, l_sc, t_sc,
                   *, margin, scale, num_classes, block_cols, ragged):
    j = pl.program_id(1)

    @pl.when(j == 0)
    def _():
        m_sc[...] = jnp.full_like(m_sc, -jnp.inf)
        l_sc[...] = jnp.zeros_like(l_sc)
        t_sc[...] = jnp.zeros_like(t_sc)

    x = out_ref[...].astype(jnp.float32)            # (rows, cols)
    labels = lbl_ref[...]                           # (rows, 1) int32
    cols = x.shape[-1]

    # Global class indices for this column tile as a (1, cols) row.
    col_ids = jax.lax.broadcasted_iota(jnp.int32, (1, cols), 1) + j * block_cols
    is_target = col_ids == labels                   # (rows, cols) bool

    pred = x if scale == 1.0 else scale * x
    if margin != 0.0:
        pred = pred - (scale * margin) * is_target.astype(jnp.float32)

    if ragged:
        # Only emitted when C % block_cols != 0; cheap (1, cols) compare + selects.
        col_valid = col_ids < num_classes
        pred = jnp.where(col_valid, pred, -jnp.inf)
        tmask = is_target & col_valid
    else:
        tmask = is_target

    # Exactly one valid target column per row across all column tiles.
    t_sc[...] += jnp.sum(jnp.where(tmask, pred, 0.0), axis=1, keepdims=True)

    # Online logsumexp accumulation.
    m_prev = m_sc[...]
    m_new = jnp.maximum(m_prev, jnp.max(pred, axis=1, keepdims=True))
    alpha = jnp.exp(m_prev - m_new)
    l_sc[...] = alpha * l_sc[...] + jnp.sum(jnp.exp(pred - m_new), axis=1, keepdims=True)
    m_sc[...] = m_new

    @pl.when(j == pl.num_programs(1) - 1)
    def _():
        nll_ref[...] = (m_sc[...] + jnp.log(l_sc[...]) - t_sc[...]).astype(nll_ref.dtype)


# --------------------------------------------------------------------------------------
# Wrapper
# --------------------------------------------------------------------------------------
def log_softmax_wrapper_loss(outputs, targets, *, margin=0.0, scale=1.0,
                             block_rows=None, block_cols=None):
    """Pallas TPU implementation of LogSoftmaxWrapper(AngularMargin(margin, scale)).forward.

    outputs: [B, 1, C] or [B, C] float logits (f32 or bf16; upcast to f32 in VMEM).
    targets: [B, 1] or [B] int class labels.
    Returns the scalar loss (KLDiv(sum)(log_softmax(pred), one_hot) / one_hot.sum()).
    """
    # TODO(synk): `length` arg of the reference forward is accepted but unused upstream; omitted.
    if outputs.ndim == 3:
        outputs = jnp.squeeze(outputs, axis=1)
    N, C = outputs.shape
    labels = jnp.reshape(targets, (N, 1)).astype(jnp.int32)

    itemsize = jnp.dtype(outputs.dtype).itemsize
    sub = _sublane_multiple(itemsize)
    padded_c = C if C <= _LANE else _round_up(C, _LANE)
    padded_n = _round_up(N, sub)

    # Hardware-aware VMEM budget (v7x: 64 MiB per TC; v5e/v6e: 128 MiB).
    try:
        info = pltpu.get_tpu_info()
        vmem_cap = int(getattr(info, "vmem_capacity_bytes", 64 << 20))
    except Exception:
        vmem_cap = 64 << 20
    small_vmem = vmem_cap <= (64 << 20)
    target_tile_bytes = (4 << 20) if small_vmem else (8 << 20)
    vmem_limit = min(max(vmem_cap - (16 << 20), 32 << 20), 64 << 20)

    # Column tile choice: prefer full-C (single-pass) whenever a minimal row tile fits.
    if block_cols is None:
        single_pass = sub * padded_c * itemsize <= target_tile_bytes
        bc = C if single_pass else min(padded_c, 64 * _LANE)
    else:
        single_pass = block_cols >= C
        bc = C if single_pass else int(block_cols)
    bc_padded = bc if bc <= _LANE else _round_up(bc, _LANE)

    # Row tile: input tile ~target_tile_bytes, and (2x double-buffered input + ~5 full-tile
    # f32 elementwise temporaries) kept under the scoped VMEM limit.
    if block_rows is None:
        per_row_in = max(1, bc_padded * itemsize)
        per_row_tot = max(1, bc_padded * (2 * itemsize + 5 * 4))
        rows = min(target_tile_bytes // per_row_in,
                   max(sub, (vmem_limit - (4 << 20)) // per_row_tot))
        rows = max(sub, (int(rows) // sub) * sub)
        block_rows = min(rows, padded_n)
        # Guarantee >=2 row tiles when possible so the "parallel" row axis can shard across
        # the two TensorCores on v7x (negligible extra grid-step cost on single-TC chips).
        if pl.cdiv(N, block_rows) == 1 and N > sub:
            block_rows = min(block_rows, _round_up(pl.cdiv(N, 2), sub))
    block_rows = int(block_rows)

    n_row = pl.cdiv(N, block_rows)

    if single_pass:
        kernel = functools.partial(_single_pass_kernel,
                                   margin=float(margin), scale=float(scale))
        nll = pl.pallas_call(
            kernel,
            out_shape=jax.ShapeDtypeStruct((N, 1), jnp.float32),
            grid_spec=pltpu.PrefetchScalarGridSpec(
                num_scalar_prefetch=0,
                grid=(n_row,),
                in_specs=[
                    pl.BlockSpec((block_rows, C), lambda i: (i, 0)),
                    pl.BlockSpec((block_rows, 1), lambda i: (i, 0)),
                ],
                out_specs=pl.BlockSpec((block_rows, 1), lambda i: (i, 0)),
            ),
            compiler_params=pltpu.CompilerParams(
                dimension_semantics=("parallel",),
                vmem_limit_bytes=vmem_limit,
            ),
            cost_estimate=pl.CostEstimate(
                flops=6 * N * C,
                transcendentals=N * C,
                bytes_accessed=N * C * itemsize + 2 * N * 4,
            ),
        )(outputs, labels)
    else:
        n_col = pl.cdiv(C, bc)
        ragged = (C % bc) != 0
        kernel = functools.partial(_online_kernel,
                                   margin=float(margin), scale=float(scale),
                                   num_classes=C, block_cols=bc, ragged=ragged)
        nll = pl.pallas_call(
            kernel,
            out_shape=jax.ShapeDtypeStruct((N, 1), jnp.float32),
            grid_spec=pltpu.PrefetchScalarGridSpec(
                num_scalar_prefetch=0,
                grid=(n_row, n_col),
                in_specs=[
                    pl.BlockSpec((block_rows, bc), lambda i, j: (i, j)),
                    pl.BlockSpec((block_rows, 1), lambda i, j: (i, 0)),
                ],
                out_specs=pl.BlockSpec((block_rows, 1), lambda i, j: (i, 0)),
                scratch_shapes=[pltpu.VMEM((block_rows, 1), jnp.float32)] * 3,
            ),
            compiler_params=pltpu.CompilerParams(
                dimension_semantics=("parallel", "arbitrary"),
                vmem_limit_bytes=vmem_limit,
            ),
            cost_estimate=pl.CostEstimate(
                flops=8 * N * C,
                transcendentals=N * C,
                bytes_accessed=N * C * itemsize + 2 * N * 4,
            ),
        )(outputs, labels)

    # KLDiv(sum) with one-hot targets == sum of per-row NLL; targets.sum() == N.
    return jnp.sum(nll) / jnp.float32(N)


def _ref_loss(outputs3, targets2, margin, scale):
    """Plain-JAX reference of the PyTorch module."""
    x = jnp.reshape(outputs3, (outputs3.shape[0], outputs3.shape[-1])).astype(jnp.float32)
    t = jax.nn.one_hot(jnp.reshape(targets2, (-1,)), x.shape[1], dtype=jnp.float32)
    pred = scale * (x - margin * t)
    logp = jax.nn.log_softmax(pred, axis=1)
    return jnp.sum(-t * logp) / jnp.sum(t)       # one-hot: KLDiv(sum)/sum == mean NLL


if __name__ == "__main__":
    key = jax.random.PRNGKey(0)
    k1, k2 = jax.random.split(key)

    # Docstring example: outputs [4, 1, 2], targets [4, 1], AngularMargin(margin=0.2, scale=32).
    ex_out = jnp.array([[1., -1.], [-1., 1.], [0.9, 0.1], [0.1, 0.9]], jnp.float32)[:, None, :]
    ex_tgt = jnp.array([[0], [1], [0], [1]], jnp.int32)

    loss_ex = jax.block_until_ready(
        log_softmax_wrapper_loss(ex_out, ex_tgt, margin=0.2, scale=32.0))
    assert 0.0 <= float(loss_ex) < 1.0
    assert jnp.allclose(loss_ex, _ref_loss(ex_out, ex_tgt, 0.2, 32.0), atol=1e-5, rtol=1e-5)

    # Identity loss_fn case (margin=0, scale=1) -> exercises both trace-time specializations.
    loss_id = jax.block_until_ready(
        log_softmax_wrapper_loss(ex_out, ex_tgt, margin=0.0, scale=1.0))
    assert 0.0 <= float(loss_id) < 1.0
    assert jnp.allclose(loss_id, _ref_loss(ex_out, ex_tgt, 0.0, 1.0), atol=1e-5, rtol=1e-5)

    # Small random case: N=13, C=200.  Forced block_cols=128 exercises the online fallback
    # path with ragged rows and a ragged (masked) last column tile.
    N, C = 13, 200
    outputs = jax.random.uniform(k1, (N, 1, C), jnp.float32, minval=-1.0, maxval=1.0)
    targets = jax.random.randint(k2, (N, 1), 0, C)

    loss_tiled = jax.block_until_ready(
        log_softmax_wrapper_loss(outputs, targets, margin=0.2, scale=30.0,
                                 block_rows=8, block_cols=128))
    assert jnp.allclose(loss_tiled, _ref_loss(outputs, targets, 0.2, 30.0),
                        atol=1e-4, rtol=1e-4)

    # Same data through the default auto path: full-C single-pass kernel, >=2 row tiles.
    loss_auto = jax.block_until_ready(
        log_softmax_wrapper_loss(outputs, targets, margin=0.2, scale=30.0))
    assert jnp.allclose(loss_auto, _ref_loss(outputs, targets, 0.2, 30.0),
                        atol=1e-4, rtol=1e-4)

    # Moderate aligned case (no ragged rows/cols) through the auto path.
    k3, k4 = jax.random.split(k1)
    out2 = jax.random.normal(k3, (32, 1, 512), jnp.float32)
    tgt2 = jax.random.randint(k4, (32, 1), 0, 512)
    loss2 = jax.block_until_ready(
        log_softmax_wrapper_loss(out2, tgt2, margin=0.2, scale=30.0))
    assert jnp.allclose(loss2, _ref_loss(out2, tgt2, 0.2, 30.0), atol=1e-4, rtol=1e-4)

    print("KERNEL_OK")
</pallas_src>

<mosaic_0001>
module attributes {stable_mosaic.version = 11 : i64} {
  func.func @_single_pass_kernel(%arg0: i32, %arg1: memref<8x2xf32, #tpu.memory_space<vmem>>, %arg2: memref<8x1xi32, #tpu.memory_space<vmem>>, %arg3: memref<8x1xf32, #tpu.memory_space<vmem>>) attributes {dimension_semantics = [#tpu.dimension_semantics<parallel>], iteration_bounds = array<i64: 1>, scalar_prefetch = 0 : i64, scratch_operands = 0 : i64, tpu.core_type = #tpu.core_type<tc>, window_params = [{transform_indices = @transform_0, window_bounds = array<i64: 8, 2>}, {transform_indices = @transform_1, window_bounds = array<i64: 8, 1>}, {transform_indices = @transform_2, window_bounds = array<i64: 8, 1>}]} {
    %c0 = arith.constant 0 : index
    %c0_0 = arith.constant 0 : index
    %0 = vector.load %arg1[%c0, %c0_0] : memref<8x2xf32, #tpu.memory_space<vmem>>, vector<8x2xf32>
    %c0_1 = arith.constant 0 : index
    %c0_2 = arith.constant 0 : index
    %1 = vector.load %arg2[%c0_1, %c0_2] : memref<8x1xi32, #tpu.memory_space<vmem>>, vector<8x1xi32>
    %2 = tpu.iota {dimensions = array<i32: 1>} : vector<1x2xi32>
    %3 = vector.broadcast %2 : vector<1x2xi32> to vector<8x2xi32>
    %4 = vector.broadcast %1 : vector<8x1xi32> to vector<8x2xi32>
    %5 = arith.cmpi eq, %3, %4 : vector<8x2xi32>
    %cst = arith.constant 3.200000e+01 : f32
    %6 = vector.broadcast %cst : f32 to vector<8x2xf32>
    %7 = arith.mulf %6, %0 : vector<8x2xf32>
    %8 = arith.extui %5 : vector<8x2xi1> to vector<8x2xi32>
    %9 = arith.sitofp %8 : vector<8x2xi32> to vector<8x2xf32>
    %cst_3 = arith.constant 6.400000e+00 : f32
    %10 = vector.broadcast %cst_3 : f32 to vector<8x2xf32>
    %11 = arith.mulf %10, %9 : vector<8x2xf32>
    %12 = arith.subf %7, %11 : vector<8x2xf32>
    %cst_4 = arith.constant 0.000000e+00 : f32
    %13 = vector.broadcast %cst_4 : f32 to vector<8x2xf32>
    %14 = arith.select %5, %12, %13 : vector<8x2xi1>, vector<8x2xf32>
    %cst_5 = arith.constant dense<0.000000e+00> : vector<8xf32>
    %15 = vector.multi_reduction <add>, %14, %cst_5 [1] : vector<8x2xf32> to vector<8xf32>
    %16 = vector.shape_cast %15 : vector<8xf32> to vector<8x1xf32>
    %cst_6 = arith.constant dense<0xFF800000> : vector<8xf32>
    %17 = vector.multi_reduction <maximumf>, %12, %cst_6 [1] : vector<8x2xf32> to vector<8xf32>
    %18 = vector.shape_cast %17 : vector<8xf32> to vector<8x1xf32>
    %19 = vector.broadcast %18 : vector<8x1xf32> to vector<8x2xf32>
    %20 = arith.subf %12, %19 : vector<8x2xf32>
    %21 = math.exp %20 : vector<8x2xf32>
    %cst_7 = arith.constant dense<0.000000e+00> : vector<8xf32>
    %22 = vector.multi_reduction <add>, %21, %cst_7 [1] : vector<8x2xf32> to vector<8xf32>
    %23 = vector.shape_cast %22 : vector<8xf32> to vector<8x1xf32>
    %24 = math.log %23 : vector<8x1xf32>
    %25 = arith.addf %18, %24 : vector<8x1xf32>
    %26 = arith.subf %25, %16 : vector<8x1xf32>
    %c0_8 = arith.constant 0 : index
    %c0_9 = arith.constant 0 : index
    %27 = vector.load %arg3[%c0_8, %c0_9] : memref<8x1xf32, #tpu.memory_space<vmem>>, vector<8x1xf32>
    tpu.vector_store %arg3[%c0_8, %c0_9], %26 {strides = array<i32>} : memref<8x1xf32, #tpu.memory_space<vmem>>, vector<8x1xf32>,
    return
  }
  func.func @transform_0(%arg0: i32) -> (i32, i32) {
    %c0_i32 = arith.constant 0 : i32
    %c0_i32_0 = arith.constant 0 : i32
    return %arg0, %c0_i32 : i32, i32
  }
  func.func @transform_1(%arg0: i32) -> (i32, i32) {
    %c0_i32 = arith.constant 0 : i32
    %c0_i32_0 = arith.constant 0 : i32
    return %arg0, %c0_i32 : i32, i32
  }
  func.func @transform_2(%arg0: i32) -> (i32, i32) {
    %c0_i32 = arith.constant 0 : i32
    %c0_i32_0 = arith.constant 0 : i32
    return %arg0, %c0_i32 : i32, i32
  }
}

</mosaic_0001>

<llo_original>
// kernel: tpu_custom_call.1
$region0: #{tpu_custom_call.1}
  #allocation0 [shape = 'u32[]', space=smem, size = 0x4, offset = 0x4, fixed_abs, tag = 'smem constant byte address 0x4 - core index']
  #allocation1 [shape = 'u32[72,128]{1,0:T(1,128)}', space=vmem, size = 0x9000, scoped, tag = 'internal scratch']
  %s0 = inlined_call_operand.vmem [shape: f32[4,2], index: 0, kind: input, shape index: {}]
  %s1 = inlined_call_operand.vmem [shape: s32[4,1], index: 1, kind: input, shape index: {}]
  %s2 = inlined_call_operand.vmem [shape: f32[4,1], index: 2, kind: output, shape index: {}]
  %s3 = sld [smem:[#allocation0]]
  $region48: #{tpu_custom_call.1} parent=0
    _
  %s5 = ssub.s32 1, %s3
  %s6 = scalar_select 0, %s5, %s3
  $region1: #{tpu_custom_call.1} parent=0
    #allocation2 [shape = 'u8[4096]{0}', space=vmem, size = 0x1000, scoped, tag = 'output window, operand 0, single buffered']
    // Predicated region
    $region2: #{tpu_custom_call.1} parent=1 // pred_check
      _
    $region3: #{tpu_custom_call.1} parent=1 // pred_check_branch
      %8 = sbr.rel (0) target = $region5
    $region4: #{tpu_custom_call.1} parent=1 // pred_region
      _
    $region5: #{tpu_custom_call.1} parent=1 // pred_fallthru
      _
    // Predicated region
    $region6: #{tpu_custom_call.1} parent=1 // pred_check
      _
    $region7: #{tpu_custom_call.1} parent=1 // pred_check_branch
      %10 = sbr.rel (0) target = $region9
    $region8: #{tpu_custom_call.1} parent=1 // pred_region
      _
    $region9: #{tpu_custom_call.1} parent=1 // pred_fallthru
      _
    %v11 = vld [vmem:[%s0] sm:$0xff]
    %v12 = vld [vmem:[%s1] sm:$0xff]
    %v13 = vlaneseq
    %v14 = vand.u32 %v13, 127
    %15 = vset.pattern.permute.xlu0 0
    %16 = vperm.xlu0 %15, %v12
    %v17 = vpop.permute.xlu0 %16
    %vm18 = vcmp.eq.s32.totalorder %v14, %v17
    %v19 = vmul.f32 %v11, 32.0
    %v20 = vsel %vm18, 1, 0
    %v21 = vcvt.s32.f32 %v20
    %v22 = vmul.f32 %v21, 6.4
    %v23 = vsub.f32 %v19, %v22
    %v24 = vsel %vm18, %v23, 0.0
    %vm25 = vcmask 15360
    %v26 = vsel %vm25, %v24, 0.0
    %27 = vadd.xlane.f32.xlu0 %v26
    %v28 = vpop.xlane.xlu0 %27
    %v29 = vsel %vm25, %v23, -inf
    %30 = vmax.xlane.f32.xlu0 %v29
    %v31 = vpop.xlane.xlu0 %30
    %v32 = vsub.f32 %v23, %v31
    %v33 = vmul.f32 %v32, 1.442695
    %v34 = vpow.pop %v33
    %v35 = vsel %vm25, %v34, 0.0
    %36 = vadd.xlane.f32.xlu0 %v35
    %v37 = vpop.xlane.xlu0 %36
    %v38 = vlog2.pop %v37
    %v39 = vmul.f32 %v38, 0.6931472
    %v40 = vadd.f32 %v31, %v39
    %v41 = vsub.f32 %v40, %v28
    %vm42 = vcmask 7168
    %43 = vst.msk [vmem:[#allocation2] sm:$0xff] %vm42, %v41
    // Predicated region
    $region10: #{tpu_custom_call.1} parent=1 // pred_check
      _
    $region11: #{tpu_custom_call.1} parent=1 // pred_check_branch
      %45 = sbr.rel (0) target = $region13
    $region12: #{tpu_custom_call.1} parent=1 // pred_region
      // Predicated region
      $region14: #{tpu_custom_call.1} parent=12 // pred_check
        _
      $region15: #{tpu_custom_call.1} parent=12 // pred_check_branch
        %47 = sbr.rel (0) target = $region17
      $region16: #{tpu_custom_call.1} parent=12 // pred_region
        // Predicated region
        $region18: #{tpu_custom_call.1} parent=16 // pred_check
          _
        $region19: #{tpu_custom_call.1} parent=16 // pred_check_branch
          %49 = sbr.rel target = $region21
        $region20: #{tpu_custom_call.1} parent=16 // pred_region
          // Predicated region
          $region33: #{tpu_custom_call.1} parent=20 // pred_check
            _
          $region34: #{tpu_custom_call.1} parent=20 // pred_check_branch
            %65 = sbr.rel (0) target = $region36
          $region35: #{tpu_custom_call.1} parent=20 // pred_region
            %s67 = ssub.s32 16, 1
            loop: start=0, step=1, limit=1
            $region37: #{tpu_custom_call.1} parent=35 // loop_pre_header
              _
            $region38: #{tpu_custom_call.1} parent=35 // loop_header
              %s69 = sphi 0, %s73
              %p70 = scmp.ge.s32.totalorder %s69, 1
              %s74 = sphi [#allocation2], [#allocation2]
              %s75 = sphi %s2, %s2
            $region39: #{tpu_custom_call.1} parent=35 // loop_header_branch
              %72 = sbr.rel (%p70) target = $region43
            $region40: #{tpu_custom_call.1} parent=35 // loop_body
              %v76 = vld [vmem:[%s74] sm:%s67]
              %77 = vst [vmem:[%s75] sm:%s67] %v76
            $region41: #{tpu_custom_call.1} parent=35 // loop_footer
              %s73 = sadd.s32 1, %s69
            $region42: #{tpu_custom_call.1} parent=35 // loop_footer_branch
              %68 = sbr.rel target = $region38
            $region43: #{tpu_custom_call.1} parent=35 // loop_exit
              _
          $region36: #{tpu_custom_call.1} parent=20 // pred_fallthru
            _
        $region21: #{tpu_custom_call.1} parent=16 // pred_fallthru
          _
        // Predicated region
        $region22: #{tpu_custom_call.1} parent=16 // pred_check
          _
        $region23: #{tpu_custom_call.1} parent=16 // pred_check_branch
          %51 = sbr.rel (0) target = $region25
        $region24: #{tpu_custom_call.1} parent=16 // pred_region
          %s53 = ssub.s32 16, 1
          loop: start=0, step=1, limit=1
          $region26: #{tpu_custom_call.1} parent=24 // loop_pre_header
            _
          $region27: #{tpu_custom_call.1} parent=24 // loop_header
            %s55 = sphi 0, %s59
            %p56 = scmp.ge.s32.totalorder %s55, 1
            %s60 = sphi [#allocation2], [#allocation2]
            %s61 = sphi %s2, %s2
          $region28: #{tpu_custom_call.1} parent=24 // loop_header_branch
            %58 = sbr.rel (%p56) target = $region32
          $region29: #{tpu_custom_call.1} parent=24 // loop_body
            %v62 = vld [vmem:[%s60] sm:%s53]
            %63 = vst [vmem:[%s61] sm:%s53] %v62
          $region30: #{tpu_custom_call.1} parent=24 // loop_footer
            %s59 = sadd.s32 1, %s55
          $region31: #{tpu_custom_call.1} parent=24 // loop_footer_branch
            %54 = sbr.rel target = $region27
          $region32: #{tpu_custom_call.1} parent=24 // loop_exit
            _
        $region25: #{tpu_custom_call.1} parent=16 // pred_fallthru
          _
      $region17: #{tpu_custom_call.1} parent=12 // pred_fallthru
        _
      %78 = vnop
    $region13: #{tpu_custom_call.1} parent=1 // pred_fallthru
      _
    // Predicated region
    $region44: #{tpu_custom_call.1} parent=1 // pred_check
      _
    $region45: #{tpu_custom_call.1} parent=1 // pred_check_branch
      %80 = sbr.rel (0) target = $region47
    $region46: #{tpu_custom_call.1} parent=1 // pred_region
      _
    $region47: #{tpu_custom_call.1} parent=1 // pred_fallthru
      _

</llo_original>
